<compile_context>
chip_gen: v7x
topology: tpu7x:2x2x1
jax: 0.10.0
libtpu: 0.0.40
codegen_flags: <defaults>
</compile_context>

<pallas_src>
import functools

import jax
import jax.numpy as jnp
from jax.experimental import pallas as pl
from jax.experimental.pallas import tpu as pltpu


def _focal_loss_kernel(pred_ref, tgt_ref, out_ref, acc_ref, *,
                       alpha, gamma, s_total, st, needs_mask):
    o = pl.program_id(1)
    i = pl.program_id(2)
    n_i = pl.num_programs(2)

    @pl.when(i == 0)
    def _():
        acc_ref[...] = jnp.zeros_like(acc_ref)

    x = pred_ref[...].astype(jnp.float32)      # (Bt, C, St, 128)
    tgt = tgt_ref[...].astype(jnp.float32)     # (Bt, C, St, 128)

    if needs_mask:
        # Spatial-row (sublane) tail mask: zero pred AND target on rows beyond
        # the valid extent so OOB / over-range tiles contribute exactly 0 and
        # never feed non-finite garbage into exp.
        valid = s_total - (o * n_i + i) * st
        row = jax.lax.broadcasted_iota(jnp.int32, x.shape, 2)
        keep = row < valid
        x = jnp.where(keep, x, 0.0)
        tgt = jnp.where(keep, tgt, 0.0)

    # --- softmax #1 over channels (axis=1 => plain VPU ops across C vregs) ---
    m = jnp.max(x, axis=1, keepdims=True)      # (Bt, 1, St, 128)
    e = jnp.exp(x - m)
    s = jnp.sum(e, axis=1, keepdims=True)
    y = e * (1.0 / s)                          # first-softmax probabilities

    # --- softmax #2 rewritten via log-sum-exp: ce = lse - y == -log(p2) ---
    e2 = jnp.exp(y)                            # y in (0, 1] -> exp safe unshifted
    s2 = jnp.sum(e2, axis=1, keepdims=True)
    lse = jnp.log(s2)                          # only reduced-shape logs
    p2 = e2 * (1.0 / s2)
    ce = lse - y

    one_m = 1.0 - p2
    if gamma == 2:
        focal = one_m * one_m                  # integer gamma -> multiplies
    else:
        focal = one_m ** gamma

    # Per-step channel reduction (C-1 VPU adds) into the C-x smaller resident
    # accumulator; cross-lane/sublane reduce + alpha are deferred to group end.
    acc_ref[...] += jnp.sum(focal * ce * tgt, axis=1)

    @pl.when(i == n_i - 1)
    def _():
        total = alpha * jnp.sum(acc_ref[...])
        # lane-dense full-block write; wrapper reads lane 0 of each row
        out_ref[...] = jnp.full(out_ref.shape, total, dtype=out_ref.dtype)


def focal_loss_pallas(pred, target, alpha=0.25, gamma=2):
    """pred, target: (N, C, H, W). Returns scalar f32 loss (reduction='sum')."""
    # TODO(synk): num_classes == 1 (sigmoid) path and 3-D integer-label targets
    # (label_to_onehot) are not implemented; this covers the softmax + 4-D
    # target path (reduction='sum') exercised by the reference module.
    N, C, H, W = pred.shape
    HW = H * W

    # --- layout: pack spatial positions onto (sublane, lane) = (S, 128) ------
    if HW % 128 != 0:
        # TODO(synk): replace this minimal (<128-column) pad with a lane-masked
        # 3-D fallback to avoid the extra HBM copy when H*W % 128 != 0.
        padc = (-HW) % 128
        pred = jnp.pad(pred.reshape(N, C, HW), ((0, 0), (0, 0), (0, padc)))
        target = jnp.pad(target.reshape(N, C, HW), ((0, 0), (0, 0), (0, padc)))
        HW += padc
    S = HW // 128
    pred4 = pred.reshape(N, C, S, 128)         # free view (merge/split minor dims)
    tgt4 = target.reshape(N, C, S, 128)

    # --- generation-aware block / VMEM budget --------------------------------
    try:
        vmem_cap = int(pltpu.get_tpu_info().vmem_capacity_bytes)
    except Exception:
        vmem_cap = 64 * 1024 * 1024            # assume smallest (v7x) if unknown
    if vmem_cap >= 96 * 1024 * 1024:           # v5e / v6e: 128 MiB physical
        block_bytes = 8 * 1024 * 1024          # per-input block target
        vmem_limit = 96 * 1024 * 1024
    else:                                      # v7x: 64 MiB physical
        block_bytes = 4 * 1024 * 1024
        vmem_limit = 44 * 1024 * 1024
    elems_budget = block_bytes // 4            # size blocks as if f32

    # Spatial sublane tile: full S if it fits the budget, else a multiple of 8.
    rows_budget = max(8, elems_budget // (C * 128))
    St = S if S <= rows_budget else (rows_budget // 8) * 8
    n_tiles = pl.cdiv(S, St)

    # Fold batch into the block when one spatial tile already covers S, so tiny
    # images still stream MiB-scale blocks instead of paying per-step overhead.
    if St == S:
        bt_cap = max(1, elems_budget // (C * S * 128))
        Bt = 1
        for d in range(min(N, bt_cap), 0, -1):
            if N % d == 0:                     # divisor -> no batch masking needed
                Bt = d
                break
    else:
        Bt = 1
    NB = N // Bt

    # Split spatial tiles into (outer "parallel", inner "arbitrary") so v7x's
    # two TensorCores get parallel work even when the batch axis is trivial.
    n_o = 2 if (NB < 2 and n_tiles >= 2) else 1
    n_i = pl.cdiv(n_tiles, n_o)

    over_range = (n_o * n_i) != n_tiles
    needs_mask = over_range or (S % St != 0)
    last_tile = n_tiles - 1

    def in_index(b, o, i):
        ti = o * n_i + i
        if over_range:
            # clamp fully-out-of-range tiles; the kernel masks them to zero
            ti = jnp.minimum(ti, last_tile)
        return (b, 0, ti, 0)

    kernel = functools.partial(
        _focal_loss_kernel, alpha=float(alpha), gamma=gamma,
        s_total=S, st=St, needs_mask=needs_mask)

    out = pl.pallas_call(
        kernel,
        out_shape=jax.ShapeDtypeStruct((NB * n_o, 128), jnp.float32),
        grid=(NB, n_o, n_i),
        in_specs=[
            pl.BlockSpec((Bt, C, St, 128), in_index),
            pl.BlockSpec((Bt, C, St, 128), in_index),
        ],
        out_specs=pl.BlockSpec((1, 128), lambda b, o, i: (b * n_o + o, 0)),
        scratch_shapes=[pltpu.VMEM((Bt, St, 128), jnp.float32)],
        compiler_params=pltpu.CompilerParams(
            # batch-block and outer-spatial axes are independent (megacore /
            # dual-TC shardable); only the inner spatial reduction is arbitrary.
            dimension_semantics=("parallel", "parallel", "arbitrary"),
            vmem_limit_bytes=vmem_limit,
        ),
    )(pred4, tgt4)

    # lane 0 of each (batch-block, outer) row holds that group's alpha-scaled sum.
    return jnp.sum(out[:, 0])


def focal_loss_ref(pred, target, alpha=0.25, gamma=2):
    """Pure-JAX reference mirroring the PyTorch module exactly."""
    p = jax.nn.softmax(pred.astype(jnp.float32), axis=1)
    p = jax.nn.softmax(p, axis=1)  # second softmax inside focal_loss
    fl = alpha * ((1.0 - p) ** gamma) * (-jnp.log(p)) * target.astype(jnp.float32)
    fl = jnp.sum(fl, axis=1)
    return jnp.sum(fl)


if __name__ == "__main__":
    # FocalLoss has no learnable parameters; nothing to initialize.
    N, C, H, W = 2, 4, 16, 16
    key = jax.random.PRNGKey(0)
    k1, k2 = jax.random.split(key)

    pred = jax.random.normal(k1, (N, C, H, W), dtype=jnp.float32)
    labels = jax.random.randint(k2, (N, H, W), 0, C)
    # one-hot target kept in bf16: values exactly representable and the target
    # HBM stream is halved relative to f32 (cast happens in-kernel).
    target = jax.nn.one_hot(labels, C, axis=1, dtype=jnp.bfloat16)  # (N, C, H, W)

    loss = focal_loss_pallas(pred, target, alpha=0.25, gamma=2)
    loss = jax.block_until_ready(loss)

    ref = focal_loss_ref(pred, target, alpha=0.25, gamma=2)
    assert jnp.allclose(loss, ref, rtol=1e-5, atol=1e-4), (loss, ref)

    print("KERNEL_OK")
</pallas_src>

<mosaic_0001>
module attributes {stable_mosaic.version = 11 : i64} {
  func.func @_focal_loss_kernel(%arg0: i32, %arg1: i32, %arg2: i32, %arg3: memref<2x4x2x128xf32, #tpu.memory_space<vmem>>, %arg4: memref<2x4x2x128xbf16, #tpu.memory_space<vmem>>, %arg5: memref<1x128xf32, #tpu.memory_space<vmem>>, %arg6: memref<2x2x128xf32, #tpu.memory_space<vmem>>) attributes {dimension_semantics = [#tpu.dimension_semantics<parallel>, #tpu.dimension_semantics<parallel>, #tpu.dimension_semantics<arbitrary>], iteration_bounds = array<i64: 1, 1, 1>, scalar_prefetch = 0 : i64, scratch_operands = 1 : i64, tpu.core_type = #tpu.core_type<tc>, window_params = [{transform_indices = @transform_0, window_bounds = array<i64: 2, 4, 2, 128>}, {transform_indices = @transform_1, window_bounds = array<i64: 2, 4, 2, 128>}, {transform_indices = @transform_2, window_bounds = array<i64: 1, 128>}]} {
    %c0_i32 = arith.constant 0 : i32
    %0 = arith.cmpi eq, %arg2, %c0_i32 : i32
    %1 = arith.extui %0 : i1 to i32
    %c0_i32_0 = arith.constant 0 : i32
    %2 = arith.cmpi ne, %1, %c0_i32_0 : i32
    scf.if %2 {
      %cst_22 = arith.constant 0.000000e+00 : f32
      %39 = vector.broadcast %cst_22 : f32 to vector<2x2x128xf32>
      %c0_23 = arith.constant 0 : index
      %c0_24 = arith.constant 0 : index
      %c0_25 = arith.constant 0 : index
      %40 = vector.load %arg6[%c0_23, %c0_24, %c0_25] : memref<2x2x128xf32, #tpu.memory_space<vmem>>, vector<2x2x128xf32>
      tpu.vector_store %arg6[%c0_23, %c0_24, %c0_25], %39 {strides = array<i32>} : memref<2x2x128xf32, #tpu.memory_space<vmem>>, vector<2x2x128xf32>,
    } else {
    }
    %c0 = arith.constant 0 : index
    %c0_1 = arith.constant 0 : index
    %c0_2 = arith.constant 0 : index
    %c0_3 = arith.constant 0 : index
    %3 = vector.load %arg3[%c0, %c0_1, %c0_2, %c0_3] : memref<2x4x2x128xf32, #tpu.memory_space<vmem>>, vector<2x4x2x128xf32>
    %c0_4 = arith.constant 0 : index
    %c0_5 = arith.constant 0 : index
    %c0_6 = arith.constant 0 : index
    %c0_7 = arith.constant 0 : index
    %4 = vector.load %arg4[%c0_4, %c0_5, %c0_6, %c0_7] : memref<2x4x2x128xbf16, #tpu.memory_space<vmem>>, vector<2x4x2x128xbf16>
    %5 = arith.extf %4 : vector<2x4x2x128xbf16> to vector<2x4x2x128xf32>
    %cst = arith.constant dense<0xFF800000> : vector<2x2x128xf32>
    %6 = vector.multi_reduction <maximumf>, %3, %cst [1] : vector<2x4x2x128xf32> to vector<2x2x128xf32>
    %7 = vector.shape_cast %6 : vector<2x2x128xf32> to vector<2x1x2x128xf32>
    %8 = vector.broadcast %7 : vector<2x1x2x128xf32> to vector<2x4x2x128xf32>
    %9 = arith.subf %3, %8 : vector<2x4x2x128xf32>
    %10 = math.exp %9 : vector<2x4x2x128xf32>
    %cst_8 = arith.constant dense<0.000000e+00> : vector<2x2x128xf32>
    %11 = vector.multi_reduction <add>, %10, %cst_8 [1] : vector<2x4x2x128xf32> to vector<2x2x128xf32>
    %12 = vector.shape_cast %11 : vector<2x2x128xf32> to vector<2x1x2x128xf32>
    %cst_9 = arith.constant 1.000000e+00 : f32
    %13 = vector.broadcast %cst_9 : f32 to vector<2x1x2x128xf32>
    %14 = arith.divf %13, %12 : vector<2x1x2x128xf32>
    %15 = vector.broadcast %14 : vector<2x1x2x128xf32> to vector<2x4x2x128xf32>
    %16 = arith.mulf %10, %15 : vector<2x4x2x128xf32>
    %17 = math.exp %16 : vector<2x4x2x128xf32>
    %cst_10 = arith.constant dense<0.000000e+00> : vector<2x2x128xf32>
    %18 = vector.multi_reduction <add>, %17, %cst_10 [1] : vector<2x4x2x128xf32> to vector<2x2x128xf32>
    %19 = vector.shape_cast %18 : vector<2x2x128xf32> to vector<2x1x2x128xf32>
    %20 = math.log %19 : vector<2x1x2x128xf32>
    %cst_11 = arith.constant 1.000000e+00 : f32
    %21 = vector.broadcast %cst_11 : f32 to vector<2x1x2x128xf32>
    %22 = arith.divf %21, %19 : vector<2x1x2x128xf32>
    %23 = vector.broadcast %22 : vector<2x1x2x128xf32> to vector<2x4x2x128xf32>
    %24 = arith.mulf %17, %23 : vector<2x4x2x128xf32>
    %25 = vector.broadcast %20 : vector<2x1x2x128xf32> to vector<2x4x2x128xf32>
    %26 = arith.subf %25, %16 : vector<2x4x2x128xf32>
    %cst_12 = arith.constant 1.000000e+00 : f32
    %27 = vector.broadcast %cst_12 : f32 to vector<2x4x2x128xf32>
    %28 = arith.subf %27, %24 : vector<2x4x2x128xf32>
    %29 = arith.mulf %28, %28 : vector<2x4x2x128xf32>
    %c0_13 = arith.constant 0 : index
    %c0_14 = arith.constant 0 : index
    %c0_15 = arith.constant 0 : index
    %30 = vector.load %arg6[%c0_13, %c0_14, %c0_15] : memref<2x2x128xf32, #tpu.memory_space<vmem>>, vector<2x2x128xf32>
    %31 = arith.mulf %29, %26 : vector<2x4x2x128xf32>
    %32 = arith.mulf %31, %5 : vector<2x4x2x128xf32>
    %cst_16 = arith.constant dense<0.000000e+00> : vector<2x2x128xf32>
    %33 = vector.multi_reduction <add>, %32, %cst_16 [1] : vector<2x4x2x128xf32> to vector<2x2x128xf32>
    %34 = arith.addf %30, %33 : vector<2x2x128xf32>
    %c0_17 = arith.constant 0 : index
    %c0_18 = arith.constant 0 : index
    %c0_19 = arith.constant 0 : index
    %35 = vector.load %arg6[%c0_17, %c0_18, %c0_19] : memref<2x2x128xf32, #tpu.memory_space<vmem>>, vector<2x2x128xf32>
    tpu.vector_store %arg6[%c0_17, %c0_18, %c0_19], %34 {strides = array<i32>} : memref<2x2x128xf32, #tpu.memory_space<vmem>>, vector<2x2x128xf32>,
    %c0_i32_20 = arith.constant 0 : i32
    %36 = arith.cmpi eq, %arg2, %c0_i32_20 : i32
    %37 = arith.extui %36 : i1 to i32
    %c0_i32_21 = arith.constant 0 : i32
    %38 = arith.cmpi ne, %37, %c0_i32_21 : i32
    scf.if %38 {
      %c0_22 = arith.constant 0 : index
      %c0_23 = arith.constant 0 : index
      %c0_24 = arith.constant 0 : index
      %39 = vector.load %arg6[%c0_22, %c0_23, %c0_24] : memref<2x2x128xf32, #tpu.memory_space<vmem>>, vector<2x2x128xf32>
      %40 = vector.shape_cast %39 : vector<2x2x128xf32> to vector<1x2x2x128xf32>
      %cst_25 = arith.constant dense<0.000000e+00> : vector<1xf32>
      %41 = vector.multi_reduction <add>, %40, %cst_25 [1, 2, 3] : vector<1x2x2x128xf32> to vector<1xf32>
      %42 = vector.shape_cast %41 : vector<1xf32> to vector<1x1x1x1xf32>
      %43 = vector.extract %42[0, 0, 0, 0] : f32 from vector<1x1x1x1xf32>
      %cst_26 = arith.constant 2.500000e-01 : f32
      %44 = arith.mulf %cst_26, %43 : f32
      %45 = vector.broadcast %44 : f32 to vector<1x128xf32>
      %c0_27 = arith.constant 0 : index
      %c0_28 = arith.constant 0 : index
      %46 = vector.load %arg5[%c0_27, %c0_28] : memref<1x128xf32, #tpu.memory_space<vmem>>, vector<1x128xf32>
      tpu.vector_store %arg5[%c0_27, %c0_28], %45 {strides = array<i32>} : memref<1x128xf32, #tpu.memory_space<vmem>>, vector<1x128xf32>,
    } else {
    }
    return
  }
  func.func @transform_0(%arg0: i32, %arg1: i32, %arg2: i32) -> (i32, i32, i32, i32) {
    %c1_i32 = arith.constant 1 : i32
    %0 = arith.muli %arg1, %c1_i32 : i32
    %1 = arith.addi %0, %arg2 : i32
    %c0_i32 = arith.constant 0 : i32
    %c0_i32_0 = arith.constant 0 : i32
    %c0_i32_1 = arith.constant 0 : i32
    return %arg0, %c0_i32, %1, %c0_i32_0 : i32, i32, i32, i32
  }
  func.func @transform_1(%arg0: i32, %arg1: i32, %arg2: i32) -> (i32, i32, i32, i32) {
    %c1_i32 = arith.constant 1 : i32
    %0 = arith.muli %arg1, %c1_i32 : i32
    %1 = arith.addi %0, %arg2 : i32
    %c0_i32 = arith.constant 0 : i32
    %c0_i32_0 = arith.constant 0 : i32
    %c0_i32_1 = arith.constant 0 : i32
    return %arg0, %c0_i32, %1, %c0_i32_0 : i32, i32, i32, i32
  }
  func.func @transform_2(%arg0: i32, %arg1: i32, %arg2: i32) -> (i32, i32) {
    %c1_i32 = arith.constant 1 : i32
    %0 = arith.muli %arg0, %c1_i32 : i32
    %1 = arith.addi %0, %arg1 : i32
    %c0_i32 = arith.constant 0 : i32
    %c0_i32_0 = arith.constant 0 : i32
    return %1, %c0_i32 : i32, i32
  }
}

</mosaic_0001>

<llo_original>
// kernel: tpu_custom_call.1
$region0: #{tpu_custom_call.1}
  #allocation0 [shape = 'u32[]', space=smem, size = 0x4, offset = 0x4, fixed_abs, tag = 'smem constant byte address 0x4 - core index']
  #allocation1 [shape = 'u32[144,128]{1,0:T(1,128)}', space=vmem, size = 0x12000, scoped, tag = 'internal scratch']
  #allocation2 [shape = 'f32[2,2,128]{2,1,0:T(2,128)}', space=vmem, size = 0x800, scoped, tag = 'scratch operand']
  %s0 = inlined_call_operand.hbm [shape: f32[2,4,2,128], index: 0, kind: input, shape index: {}]
  %s1 = inlined_call_operand.hbm [shape: bf16[2,4,2,128], index: 1, kind: input, shape index: {}]
  %s2 = inlined_call_operand.hbm [shape: f32[1,128], index: 2, kind: output, shape index: {}]
  %s3 = sld [smem:[#allocation0]]
  $region34: #{tpu_custom_call.1} parent=0
    _
  %s5 = ssub.s32 1, %s3
  %s6 = scalar_select 0, %s5, %s3
  $region1: #{tpu_custom_call.1} parent=0
    #allocation3 [shape = 'u8[8192]{0}', space=vmem, size = 0x2000, scoped, tag = 'input window, operand 0, single buffered']
    #allocation4 [shape = 's32[1]{0}', space=sflag, size = 0x4, scoped, tag = 'scoped memory for tpu_custom_call.1']
    #allocation5 [shape = 's32[1]{0}', space=sflag, size = 0x4, scoped, tag = 'scoped memory for tpu_custom_call.1']
    #allocation6 [shape = 'u8[4096]{0}', space=vmem, size = 0x1000, scoped, tag = 'input window, operand 1, single buffered']
    #allocation7 [shape = 's32[1]{0}', space=sflag, size = 0x4, scoped, tag = 'scoped memory for tpu_custom_call.1']
    #allocation8 [shape = 'u8[512]{0}', space=vmem, size = 0x400, scoped, tag = 'output window, operand 0, single buffered']
    %7 = vsyncpa [#allocation4], 0
    %8 = vsyncpa [#allocation7], 0
    %9 = vsyncpa [#allocation5], 0
    // Predicated region
    $region2: #{tpu_custom_call.1} parent=1 // pred_check
      _
    $region3: #{tpu_custom_call.1} parent=1 // pred_check_branch
      %11 = sbr.rel (0) target = $region5
    $region4: #{tpu_custom_call.1} parent=1 // pred_region
      %s12 = sadd.s32 0, 0
      %s14 = ssub.s32 256, 256
      %15 = vsyncadd [#allocation4], %s14
      %s16 = smul.addr %s12, 32
      %s17 = scalar_lea.hbm %s0, %s16
      %s18 = sshll.u32 [#allocation3], 4
      %s19 = int_to_ptr.vmem [resolvable:$true] %s18
      %24 = dma.hbm_to_vmem [thread:$0]  %s17, 256, %s19, [#allocation4], 32, 32, 2
    $region5: #{tpu_custom_call.1} parent=1 // pred_fallthru
      _
    // Predicated region
    $region6: #{tpu_custom_call.1} parent=1 // pred_check
      _
    $region7: #{tpu_custom_call.1} parent=1 // pred_check_branch
      %26 = sbr.rel (0) target = $region9
    $region8: #{tpu_custom_call.1} parent=1 // pred_region
      %s27 = sadd.s32 0, 0
      %s29 = ssub.s32 128, 128
      %30 = vsyncadd [#allocation7], %s29
      %s31 = smul.addr %s27, 16
      %s32 = scalar_lea.hbm %s1, %s31
      %s33 = sshll.u32 [#allocation6], 4
      %s34 = int_to_ptr.vmem [resolvable:$true] %s33
      %39 = dma.hbm_to_vmem [thread:$0]  %s32, 128, %s34, [#allocation7], 16, 16, 1
    $region9: #{tpu_custom_call.1} parent=1 // pred_fallthru
      _
    // Predicated region
    $region10: #{tpu_custom_call.1} parent=1 // pred_check
      _
    $region11: #{tpu_custom_call.1} parent=1 // pred_check_branch
      %41 = sbr.rel (0) target = $region13
    $region12: #{tpu_custom_call.1} parent=1 // pred_region
      %42 = dma.done [#allocation4], 256
    $region13: #{tpu_custom_call.1} parent=1 // pred_fallthru
      _
    // Predicated region
    $region14: #{tpu_custom_call.1} parent=1 // pred_check
      _
    $region15: #{tpu_custom_call.1} parent=1 // pred_check_branch
      %44 = sbr.rel (0) target = $region17
    $region16: #{tpu_custom_call.1} parent=1 // pred_region
      %45 = dma.done [#allocation7], 128
    $region17: #{tpu_custom_call.1} parent=1 // pred_fallthru
      _
    %s46 = sadd.s32 0, 0
    %s47 = sadd.s32 0, 0
    %s48 = sadd.s32 0, 0
    %p49 = scmp.eq.s32.totalorder 0, 0
    // Predicated region
    $region18: #{tpu_custom_call.1} parent=1 // pred_check
      %p50 = pneg %p49
    $region19: #{tpu_custom_call.1} parent=1 // pred_check_branch
      %52 = sbr.rel (%p50) target = $region21
    $region20: #{tpu_custom_call.1} parent=1 // pred_region
      %53 = vst [vmem:[#allocation2] sm:$0x3] 0.0
      %54 = vst [vmem:[#allocation2 + $0x2] sm:$0x3] 0.0
    $region21: #{tpu_custom_call.1} parent=1 // pred_fallthru
      _
    %v55 = vld [vmem:[#allocation3] sm:$0x3]
    %v56 = vld [vmem:[#allocation3 + $0x2] sm:$0x3]
    %v57 = vld [vmem:[#allocation3 + $0x4] sm:$0x3]
    %v58 = vld [vmem:[#allocation3 + $0x6] sm:$0x3]
    %v59 = vld [vmem:[#allocation3 + $0x8] sm:$0x3]
    %v60 = vld [vmem:[#allocation3 + $0xa] sm:$0x3]
    %v61 = vld [vmem:[#allocation3 + $0xc] sm:$0x3]
    %v62 = vld [vmem:[#allocation3 + $0xe] sm:$0x3]
    %v63 = vld [vmem:[#allocation6] sm:$0x1]
    %v64 = vld [vmem:[#allocation6 + $0x1] sm:$0x1]
    %v65 = vld [vmem:[#allocation6 + $0x2] sm:$0x1]
    %v66 = vld [vmem:[#allocation6 + $0x3] sm:$0x1]
    %v67 = vld [vmem:[#allocation6 + $0x4] sm:$0x1]
    %v68 = vld [vmem:[#allocation6 + $0x5] sm:$0x1]
    %v69 = vld [vmem:[#allocation6 + $0x6] sm:$0x1]
    %v70 = vld [vmem:[#allocation6 + $0x7] sm:$0x1]
    %v71 = vunpack.c.l.bf16 %v63
    %v72 = vunpack.c.l.bf16 %v64
    %v73 = vunpack.c.l.bf16 %v65
    %v74 = vunpack.c.l.bf16 %v66
    %v75 = vunpack.c.l.bf16 %v67
    %v76 = vunpack.c.l.bf16 %v68
    %v77 = vunpack.c.l.bf16 %v69
    %v78 = vunpack.c.l.bf16 %v70
    %vm79 = vcmask 1041408
    %v80 = vsel %vm79, %v55, -inf
    %v81 = vsel %vm79, %v56, -inf
    %v82 = vsel %vm79, %v57, -inf
    %v83 = vmax.f32 %v80, %v82
    %v84 = vsel %vm79, %v58, -inf
    %v85 = vmax.f32 %v81, %v84
    %v86 = vmax.f32 %v83, %v85
    %v87 = vsel %vm79, %v59, -inf
    %v88 = vsel %vm79, %v60, -inf
    %v89 = vsel %vm79, %v61, -inf
    %v90 = vmax.f32 %v87, %v89
    %v91 = vsel %vm79, %v62, -inf
    %v92 = vmax.f32 %v88, %v91
    %v93 = vmax.f32 %v90, %v92
    %v94 = vsub.f32 %v55, %v86
    %v95 = vsub.f32 %v56, %v86
    %v96 = vsub.f32 %v57, %v86
    %v97 = vsub.f32 %v58, %v86
    %v98 = vsub.f32 %v59, %v93
    %v99 = vsub.f32 %v60, %v93
    %v100 = vsub.f32 %v61, %v93
    %v101 = vsub.f32 %v62, %v93
    %v102 = vmul.f32 %v94, 1.442695
    %v103 = vpow.pop %v102
    %v104 = vmul.f32 %v95, 1.442695
    %v105 = vpow.pop %v104
    %v106 = vmul.f32 %v96, 1.442695
    %v107 = vpow.pop %v106
    %v108 = vmul.f32 %v97, 1.442695
    %v109 = vpow.pop %v108
    %v110 = vmul.f32 %v98, 1.442695
    %v111 = vpow.pop %v110
    %v112 = vmul.f32 %v99, 1.442695
    %v113 = vpow.pop %v112
    %v114 = vmul.f32 %v100, 1.442695
    %v115 = vpow.pop %v114
    %v116 = vmul.f32 %v101, 1.442695
    %v117 = vpow.pop %v116
    %v118 = vsel %vm79, %v103, 0.0
    %v119 = vsel %vm79, %v105, 0.0
    %v120 = vadd.f32 %v118, %v119
    %v121 = vsel %vm79, %v107, 0.0
    %v122 = vadd.f32 %v120, %v121
    %v123 = vsel %vm79, %v109, 0.0
    %v124 = vadd.f32 %v122, %v123
    %v125 = vsel %vm79, %v111, 0.0
    %v126 = vsel %vm79, %v113, 0.0
    %v127 = vadd.f32 %v125, %v126
    %v128 = vsel %vm79, %v115, 0.0
    %v129 = vadd.f32 %v127, %v128
    %v130 = vsel %vm79, %v117, 0.0
    %v131 = vadd.f32 %v129, %v130
    %v132 = vrcp.pop %v124
    %v133 = vmul.f32 1.0, %v132
    %v134 = vrcp.pop %v131
    %v135 = vmul.f32 1.0, %v134
    %v136 = vmul.f32 %v103, %v133
    %v137 = vmul.f32 %v105, %v133
    %v138 = vmul.f32 %v107, %v133
    %v139 = vmul.f32 %v109, %v133
    %v140 = vmul.f32 %v111, %v135
    %v141 = vmul.f32 %v113, %v135
    %v142 = vmul.f32 %v115, %v135
    %v143 = vmul.f32 %v117, %v135
    %v144 = vmul.f32 %v136, 1.442695
    %v145 = vpow.pop %v144
    %v146 = vmul.f32 %v137, 1.442695
    %v147 = vpow.pop %v146
    %v148 = vmul.f32 %v138, 1.442695
    %v149 = vpow.pop %v148
    %v150 = vmul.f32 %v139, 1.442695
    %v151 = vpow.pop %v150
    %v152 = vmul.f32 %v140, 1.442695
    %v153 = vpow.pop %v152
    %v154 = vmul.f32 %v141, 1.442695
    %v155 = vpow.pop %v154
    %v156 = vmul.f32 %v142, 1.442695
    %v157 = vpow.pop %v156
    %v158 = vmul.f32 %v143, 1.442695
    %v159 = vpow.pop %v158
    %v160 = vsel %vm79, %v145, 0.0
    %v161 = vsel %vm79, %v147, 0.0
    %v162 = vadd.f32 %v160, %v161
    %v163 = vsel %vm79, %v149, 0.0
    %v164 = vadd.f32 %v162, %v163
    %v165 = vsel %vm79, %v151, 0.0
    %v166 = vadd.f32 %v164, %v165
    %v167 = vsel %vm79, %v153, 0.0
    %v168 = vsel %vm79, %v155, 0.0
    %v169 = vadd.f32 %v167, %v168
    %v170 = vsel %vm79, %v157, 0.0
    %v171 = vadd.f32 %v169, %v170
    %v172 = vsel %vm79, %v159, 0.0
    %v173 = vadd.f32 %v171, %v172
    %v174 = vlog2.pop %v166
    %v175 = vmul.f32 %v174, 0.6931472
    %v176 = vlog2.pop %v173
    %v177 = vmul.f32 %v176, 0.6931472
    %v178 = vrcp.pop %v166
    %v179 = vmul.f32 1.0, %v178
    %v180 = vrcp.pop %v173
    %v181 = vmul.f32 1.0, %v180
    %v182 = vmul.f32 %v145, %v179
    %v183 = vmul.f32 %v147, %v179
    %v184 = vmul.f32 %v149, %v179
    %v185 = vmul.f32 %v151, %v179
    %v186 = vmul.f32 %v153, %v181
    %v187 = vmul.f32 %v155, %v181
    %v188 = vmul.f32 %v157, %v181
    %v189 = vmul.f32 %v159, %v181
    %v190 = vsub.f32 %v175, %v136
    %v191 = vsub.f32 %v175, %v137
    %v192 = vsub.f32 %v175, %v138
    %v193 = vsub.f32 %v175, %v139
    %v194 = vsub.f32 %v177, %v140
    %v195 = vsub.f32 %v177, %v141
    %v196 = vsub.f32 %v177, %v142
    %v197 = vsub.f32 %v177, %v143
    %v198 = vsub.f32 1.0, %v182
    %v199 = vsub.f32 1.0, %v183
    %v200 = vsub.f32 1.0, %v184
    %v201 = vsub.f32 1.0, %v185
    %v202 = vsub.f32 1.0, %v186
    %v203 = vsub.f32 1.0, %v187
    %v204 = vsub.f32 1.0, %v188
    %v205 = vsub.f32 1.0, %v189
    %v206 = vmul.f32 %v198, %v198
    %v207 = vmul.f32 %v199, %v199
    %v208 = vmul.f32 %v200, %v200
    %v209 = vmul.f32 %v201, %v201
    %v210 = vmul.f32 %v202, %v202
    %v211 = vmul.f32 %v203, %v203
    %v212 = vmul.f32 %v204, %v204
    %v213 = vmul.f32 %v205, %v205
    %v214 = vld [vmem:[#allocation2] sm:$0x3]
    %v215 = vld [vmem:[#allocation2 + $0x2] sm:$0x3]
    %v216 = vmul.f32 %v206, %v190
    %v217 = vmul.f32 %v207, %v191
    %v218 = vmul.f32 %v208, %v192
    %v219 = vmul.f32 %v209, %v193
    %v220 = vmul.f32 %v210, %v194
    %v221 = vmul.f32 %v211, %v195
    %v222 = vmul.f32 %v212, %v196
    %v223 = vmul.f32 %v213, %v197
    %v224 = vmul.f32 %v216, %v71
    %v225 = vmul.f32 %v217, %v72
    %v226 = vmul.f32 %v218, %v73
    %v227 = vmul.f32 %v219, %v74
    %v228 = vmul.f32 %v220, %v75
    %v229 = vmul.f32 %v221, %v76
    %v230 = vmul.f32 %v222, %v77
    %v231 = vmul.f32 %v223, %v78
    %v232 = vsel %vm79, %v224, 0.0
    %v233 = vsel %vm79, %v225, 0.0
    %v234 = vadd.f32 %v232, %v233
    %v235 = vsel %vm79, %v226, 0.0
    %v236 = vadd.f32 %v234, %v235
    %v237 = vsel %vm79, %v227, 0.0
    %v238 = vadd.f32 %v236, %v237
    %v239 = vsel %vm79, %v228, 0.0
    %v240 = vsel %vm79, %v229, 0.0
    %v241 = vadd.f32 %v239, %v240
    %v242 = vsel %vm79, %v230, 0.0
    %v243 = vadd.f32 %v241, %v242
    %v244 = vsel %vm79, %v231, 0.0
    %v245 = vadd.f32 %v243, %v244
    %v246 = vadd.f32 %v214, %v238
    %v247 = vadd.f32 %v215, %v245
    %248 = vst [vmem:[#allocation2] sm:$0x3] %v246
    %249 = vst [vmem:[#allocation2 + $0x2] sm:$0x3] %v247
    // Predicated region
    $region22: #{tpu_custom_call.1} parent=1 // pred_check
      %p250 = pneg %p49
    $region23: #{tpu_custom_call.1} parent=1 // pred_check_branch
      %252 = sbr.rel (%p250) target = $region25
    $region24: #{tpu_custom_call.1} parent=1 // pred_region
      %v253 = vld [vmem:[#allocation2] sm:$0x3]
      %v254 = vld [vmem:[#allocation2 + $0x2] sm:$0x3]
      %v255 = vsel %vm79, %v253, 0.0
      %v256 = vsel %vm79, %v254, 0.0
      %v257 = vadd.f32 %v255, %v256
      %258 = vadd.xlane.f32.xlu0 %v257
      %v259 = vpop.xlane.xlu0 %258
      %v260 = vrot.slane %v259, 4
      %v261 = vadd.f32 %v259, %v260
      %v262 = vrot.slane %v261, 2
      %v263 = vadd.f32 %v261, %v262
      %v264 = vrot.slane %v263, 1
      %v265 = vadd.f32 %v263, %v264
      %s266 = vtos %v265
      %s267 = smul.f32 %s266, 0.25
      %v268 = vstv %s267
      %269 = vst [vmem:[#allocation8] sm:$0x1] %v268
    $region25: #{tpu_custom_call.1} parent=1 // pred_fallthru
      _
    // Predicated region
    $region26: #{tpu_custom_call.1} parent=1 // pred_check
      _
    $region27: #{tpu_custom_call.1} parent=1 // pred_check_branch
      %271 = sbr.rel (0) target = $region29
    $region28: #{tpu_custom_call.1} parent=1 // pred_region
      %s272 = sadd.s32 0, 0
      %s274 = ssub.s32 16, 16
      %275 = vsyncadd [#allocation5], %s274
      %s276 = smul.addr %s272, 16
      %s277 = scalar_lea.hbm %s2, %s276
      %s279 = sshll.u32 [#allocation8], 4
      %s280 = int_to_ptr.vmem [resolvable:$true] %s279
      %282 = dma.vmem_to_hbm [thread:$0]  %s280, 16, %s277, [#allocation5]
    $region29: #{tpu_custom_call.1} parent=1 // pred_fallthru
      _
    // Predicated region
    $region30: #{tpu_custom_call.1} parent=1 // pred_check
      _
    $region31: #{tpu_custom_call.1} parent=1 // pred_check_branch
      %284 = sbr.rel (0) target = $region33
    $region32: #{tpu_custom_call.1} parent=1 // pred_region
      %285 = dma.done [#allocation5], 16
    $region33: #{tpu_custom_call.1} parent=1 // pred_fallthru
      _
    %286 = vsyncpa [#allocation4], 1
    %287 = vsyncpa [#allocation7], 1
    %288 = vsyncpa [#allocation5], 1

</llo_original>
